<compile_context>
chip_gen: v6e
topology: v6e:2x2x1
jax: 0.10.0
libtpu: 0.0.40
codegen_flags: <defaults>
</compile_context>

<pallas_src>
import functools

import jax
import jax.numpy as jnp
from jax.experimental import pallas as pl
from jax.experimental.pallas import tpu as pltpu


# ---------------------------------------------------------------------------
# Pooling kernel, single seq step (default): sum -> *1/len -> +bias -> sigmoid
# ---------------------------------------------------------------------------
def _pool_kernel_single(scores_ref, inv_len_ref, bias_ref, out_ref):
    # scores_ref: (seq, tb)   inv_len_ref: (1, tb)   bias_ref: SMEM (1,)   out_ref: (1, tb)
    s = jnp.sum(scores_ref[...], axis=0, keepdims=True)
    out_ref[...] = jax.nn.sigmoid(s * inv_len_ref[...] + bias_ref[0])


# ---------------------------------------------------------------------------
# Pooling kernel, multi seq step (large seq): VMEM accumulator across the
# trailing "arbitrary" reduction axis, init/finalize via pl.when.
# ---------------------------------------------------------------------------
def _pool_kernel_multi(scores_ref, inv_len_ref, bias_ref, out_ref, acc_ref):
    # scores_ref: (ts, tb)   inv_len_ref: (1, tb) resident   acc_ref: (1, tb) f32 scratch
    s = pl.program_id(1)

    @pl.when(s == 0)
    def _init():
        acc_ref[...] = jnp.zeros_like(acc_ref)

    acc_ref[...] += jnp.sum(scores_ref[...], axis=0, keepdims=True)

    @pl.when(s == pl.num_programs(1) - 1)
    def _finalize():
        out_ref[...] = jax.nn.sigmoid(acc_ref[...] * inv_len_ref[...] + bias_ref[0])


def _pool_scale_sigmoid(scores, inv_len, bias, *, ts=None, tb=None):
    seq, batch = scores.shape

    # Batch tile: full batch by default (fewest grid steps); at large 256-divisible
    # batch keep tb=256 so v7x megacore gets >=2 "parallel" tiles.
    if tb is None:
        tb = batch if (batch <= 256 or batch % 256 != 0) else 256
    if batch % tb != 0:
        tb = batch

    # Seq tile: full seq unless a double-buffered (ts, tb) f32 block would exceed
    # ~8 MiB (headroom under v7x's 32 MiB scoped / 64 MiB physical VMEM).
    vmem_budget = 8 * 1024 * 1024
    if ts is None:
        if seq * tb * 4 * 2 <= vmem_budget:
            ts = seq
        else:
            ts = max(
                (c for c in (4096, 2048, 1024, 512, 256, 128, 64, 32, 16, 8)
                 if seq % c == 0 and c * tb * 4 * 2 <= vmem_budget),
                default=seq)
    if seq % ts != 0:
        ts = seq

    n_b = batch // tb
    n_s = seq // ts

    if n_s == 1:
        # Single seq step: no scratch accumulator, no reduction grid axis.
        return pl.pallas_call(
            _pool_kernel_single,
            out_shape=jax.ShapeDtypeStruct((1, batch), jnp.float32),
            grid=(n_b,),
            in_specs=[
                pl.BlockSpec((seq, tb), lambda b: (0, b)),
                pl.BlockSpec((1, tb), lambda b: (0, b)),
                pl.BlockSpec(memory_space=pltpu.MemorySpace.SMEM),   # scalar bias
            ],
            out_specs=pl.BlockSpec((1, tb), lambda b: (0, b)),        # lane-dense output
            compiler_params=pltpu.CompilerParams(
                dimension_semantics=("parallel",),
                vmem_limit_bytes=32 * 1024 * 1024),
        )(scores, inv_len, bias)

    # Multi-step seq reduction (only for very large seq).
    return pl.pallas_call(
        _pool_kernel_multi,
        out_shape=jax.ShapeDtypeStruct((1, batch), jnp.float32),
        grid=(n_b, n_s),   # batch parallel, seq = trailing reduction axis
        in_specs=[
            pl.BlockSpec((ts, tb), lambda b, s: (s, b)),
            pl.BlockSpec((1, tb), lambda b, s: (0, b)),               # resident over seq
            pl.BlockSpec(memory_space=pltpu.MemorySpace.SMEM),
        ],
        out_specs=pl.BlockSpec((1, tb), lambda b, s: (0, b)),
        scratch_shapes=[pltpu.VMEM((1, tb), jnp.float32)],
        compiler_params=pltpu.CompilerParams(
            dimension_semantics=("parallel", "arbitrary"),
            vmem_limit_bytes=32 * 1024 * 1024),
    )(scores, inv_len, bias)


# ---------------------------------------------------------------------------
# Forward pass (matches Baseline.forward semantics)
# ---------------------------------------------------------------------------
@functools.partial(jax.jit, static_argnames=("ts", "tb"))
def baseline_forward(x_ids, lengths, vocab_vectors, fc1_w, fc1_b, *, ts=None, tb=None):
    """x_ids: (seq, batch) int32 (seq-first, matching torch.sum(x, dim=0));
    lengths: (batch,); vocab_vectors: (V, dim); fc1_w: (1, dim); fc1_b: (1,).
    Returns (batch,) float32 sigmoid outputs."""
    seq, batch = x_ids.shape

    # TODO(synk): the data-dependent id->score gather has no clean vectorized Pallas/Mosaic
    # equivalent, so the GEMV + gather stay as plain JAX; XLA fuses them into one fusion and
    # only seq*batch*4 bytes of per-token scores ever hit HBM.
    w = fc1_w.astype(jnp.float32).reshape(-1)                        # (dim,)
    t = vocab_vectors.astype(jnp.float32) @ w                        # (V,)  per-token logit contrib
    token_scores = jnp.take(t, x_ids, axis=0)                        # (seq, batch) f32

    inv_len = (1.0 / lengths.astype(jnp.float32)).reshape(1, batch)  # exact division
    bias = fc1_b.astype(jnp.float32).reshape(1)

    out = _pool_scale_sigmoid(token_scores, inv_len, bias, ts=ts, tb=tb)  # (1, batch)
    return out[0]                                                    # torch .squeeze()


if __name__ == "__main__":
    vocab_size = 1024
    embedding_dim = 64
    seq_len = 64
    batch = 256

    key = jax.random.PRNGKey(0)
    k_vec, k_w, k_b, k_ids, k_len = jax.random.split(key, 5)

    vocab_vectors = jax.random.normal(k_vec, (vocab_size, embedding_dim), jnp.float32)
    fc1_w = jax.random.normal(k_w, (1, embedding_dim), jnp.float32) * 0.1
    fc1_b = jax.random.normal(k_b, (1,), jnp.float32) * 0.1

    x_ids = jax.random.randint(k_ids, (seq_len, batch), 0, vocab_size, jnp.int32)
    lengths = jax.random.randint(k_len, (batch,), 1, seq_len + 1, jnp.int32)

    # Pure-JAX reference computed the original (un-rewritten) way.
    emb_ref = jnp.take(vocab_vectors, x_ids, axis=0)                 # (seq, batch, dim)
    pooled_ref = emb_ref.sum(axis=0) / lengths.astype(jnp.float32)[:, None]
    ref = jax.nn.sigmoid(pooled_ref @ fc1_w.T + fc1_b)[:, 0]

    # Default path: grid (1,) -- single full-seq, full-batch block, no scratch.
    out = baseline_forward(x_ids, lengths, vocab_vectors, fc1_w, fc1_b)
    out = jax.block_until_ready(out)
    assert out.shape == (batch,)
    assert jnp.allclose(out, ref, rtol=1e-4, atol=1e-5), (out, ref)

    # Also exercise the multi-step seq-reduction accumulator path (used only for huge seq).
    out_multi = baseline_forward(x_ids, lengths, vocab_vectors, fc1_w, fc1_b, ts=16)
    out_multi = jax.block_until_ready(out_multi)
    assert jnp.allclose(out_multi, ref, rtol=1e-4, atol=1e-5), (out_multi, ref)

    print("KERNEL_OK")
</pallas_src>

<mosaic_0001>
module attributes {stable_mosaic.version = 11 : i64} {
  func.func @_pool_kernel_single(%arg0: i32, %arg1: memref<64x256xf32, #tpu.memory_space<vmem>>, %arg2: memref<1x256xf32, #tpu.memory_space<vmem>>, %arg3: memref<1xf32, #tpu.memory_space<smem>>, %arg4: memref<1x256xf32, #tpu.memory_space<vmem>>) attributes {dimension_semantics = [#tpu.dimension_semantics<parallel>], iteration_bounds = array<i64: 1>, scalar_prefetch = 0 : i64, scratch_operands = 0 : i64, tpu.core_type = #tpu.core_type<tc>, window_params = [{transform_indices = @transform_0, window_bounds = array<i64: 64, 256>}, {transform_indices = @transform_1, window_bounds = array<i64: 1, 256>}, {transform_indices = @transform_2, window_bounds = array<i64: 1>}, {transform_indices = @transform_3, window_bounds = array<i64: 1, 256>}]} {
    %c0 = arith.constant 0 : index
    %c0_0 = arith.constant 0 : index
    %0 = vector.load %arg1[%c0, %c0_0] : memref<64x256xf32, #tpu.memory_space<vmem>>, vector<64x256xf32>
    %cst = arith.constant dense<0.000000e+00> : vector<256xf32>
    %1 = vector.multi_reduction <add>, %0, %cst [0] : vector<64x256xf32> to vector<256xf32>
    %2 = vector.shape_cast %1 : vector<256xf32> to vector<1x256xf32>
    %c0_1 = arith.constant 0 : index
    %c0_2 = arith.constant 0 : index
    %3 = vector.load %arg2[%c0_1, %c0_2] : memref<1x256xf32, #tpu.memory_space<vmem>>, vector<1x256xf32>
    %4 = arith.mulf %2, %3 : vector<1x256xf32>
    %c0_3 = arith.constant 0 : index
    %5 = memref.load %arg3[%c0_3] : memref<1xf32, #tpu.memory_space<smem>>
    %6 = vector.broadcast %5 : f32 to vector<1x256xf32>
    %7 = arith.addf %4, %6 : vector<1x256xf32>
    %8 = arith.negf %7 : vector<1x256xf32>
    %9 = math.exp %8 : vector<1x256xf32>
    %cst_4 = arith.constant 1.000000e+00 : f32
    %10 = vector.broadcast %cst_4 : f32 to vector<1x256xf32>
    %11 = arith.addf %10, %9 : vector<1x256xf32>
    %12 = arith.divf %10, %11 : vector<1x256xf32>
    %c0_5 = arith.constant 0 : index
    %c0_6 = arith.constant 0 : index
    %13 = vector.load %arg4[%c0_5, %c0_6] : memref<1x256xf32, #tpu.memory_space<vmem>>, vector<1x256xf32>
    tpu.vector_store %arg4[%c0_5, %c0_6], %12 {strides = array<i32>} : memref<1x256xf32, #tpu.memory_space<vmem>>, vector<1x256xf32>,
    return
  }
  func.func @transform_0(%arg0: i32) -> (i32, i32) {
    %c0_i32 = arith.constant 0 : i32
    %c0_i32_0 = arith.constant 0 : i32
    return %c0_i32, %arg0 : i32, i32
  }
  func.func @transform_1(%arg0: i32) -> (i32, i32) {
    %c0_i32 = arith.constant 0 : i32
    %c0_i32_0 = arith.constant 0 : i32
    return %c0_i32, %arg0 : i32, i32
  }
  func.func @transform_2(%arg0: i32) -> i32 {
    %c0_i32 = arith.constant 0 : i32
    %c0_i32_0 = arith.constant 0 : i32
    return %c0_i32 : i32
  }
  func.func @transform_3(%arg0: i32) -> (i32, i32) {
    %c0_i32 = arith.constant 0 : i32
    %c0_i32_0 = arith.constant 0 : i32
    return %c0_i32, %arg0 : i32, i32
  }
}

</mosaic_0001>

<llo_original>
// kernel: baseline_forward.1
$region0: #{baseline_forward.1}
  #allocation0 [shape = 'u32[]', space=smem, size = 0x4, offset = 0x4, fixed_abs, tag = 'smem constant byte address 0x4 - core index']
  #allocation1 [shape = 'u32[144,128]{1,0:T(1,128)}', space=vmem, size = 0x12000, scoped, tag = 'internal scratch']
  #allocation2 [shape = 'f32[1]{0:T(128)S(6)}', space=smem, size = 0x200, scoped, tag = 'scoped memory for baseline_forward.1']
  %s0 = inlined_call_operand.vmem [shape: f32[64,256], index: 0, kind: input, shape index: {}]
  %s1 = inlined_call_operand.vmem [shape: f32[1,256], index: 1, kind: input, shape index: {}]
  %s2 = inlined_call_operand.<no memory space> [shape: f32[1], index: 2, kind: input, shape index: {}]
  %s3 = inlined_call_operand.hbm [shape: f32[1,256], index: 3, kind: output, shape index: {}]
  %s4 = sld [smem:[#allocation0]]
  $region22: #{baseline_forward.1} parent=0
    _
  %s6 = ssub.s32 1, %s4
  %s7 = scalar_select 0, %s6, %s4
  %8 = sst [smem:[#allocation2]] %s2
  $region1: #{baseline_forward.1} parent=0
    #allocation3 [shape = 'u8[1024]{0}', space=vmem, size = 0x400, scoped, tag = 'output window, operand 0, single buffered']
    #allocation4 [shape = 's32[1]{0}', space=sflag, size = 0x4, scoped, tag = 'scoped memory for baseline_forward.1']
    %9 = vsyncpa [#allocation4], 0
    // Predicated region
    $region2: #{baseline_forward.1} parent=1 // pred_check
      _
    $region3: #{baseline_forward.1} parent=1 // pred_check_branch
      %11 = sbr.rel (0) target = $region5
    $region4: #{baseline_forward.1} parent=1 // pred_region
      _
    $region5: #{baseline_forward.1} parent=1 // pred_fallthru
      _
    // Predicated region
    $region6: #{baseline_forward.1} parent=1 // pred_check
      _
    $region7: #{baseline_forward.1} parent=1 // pred_check_branch
      %13 = sbr.rel (0) target = $region9
    $region8: #{baseline_forward.1} parent=1 // pred_region
      _
    $region9: #{baseline_forward.1} parent=1 // pred_fallthru
      _
    // Predicated region
    $region10: #{baseline_forward.1} parent=1 // pred_check
      _
    $region11: #{baseline_forward.1} parent=1 // pred_check_branch
      %15 = sbr.rel (0) target = $region13
    $region12: #{baseline_forward.1} parent=1 // pred_region
      _
    $region13: #{baseline_forward.1} parent=1 // pred_fallthru
      _
    %v16 = vld [vmem:[%s0] sm:$0xff]
    %v17 = vld [vmem:[%s0 + $0x8] sm:$0xff]
    %v18 = vld [vmem:[%s0 + $0x10] sm:$0xff]
    %v19 = vld [vmem:[%s0 + $0x18] sm:$0xff]
    %v20 = vld [vmem:[%s0 + $0x20] sm:$0xff]
    %v21 = vld [vmem:[%s0 + $0x28] sm:$0xff]
    %v22 = vld [vmem:[%s0 + $0x30] sm:$0xff]
    %v23 = vld [vmem:[%s0 + $0x38] sm:$0xff]
    %v24 = vld [vmem:[%s0 + $0x40] sm:$0xff]
    %v25 = vld [vmem:[%s0 + $0x48] sm:$0xff]
    %v26 = vld [vmem:[%s0 + $0x50] sm:$0xff]
    %v27 = vld [vmem:[%s0 + $0x58] sm:$0xff]
    %v28 = vld [vmem:[%s0 + $0x60] sm:$0xff]
    %v29 = vld [vmem:[%s0 + $0x68] sm:$0xff]
    %v30 = vld [vmem:[%s0 + $0x70] sm:$0xff]
    %v31 = vld [vmem:[%s0 + $0x78] sm:$0xff]
    %v32 = vadd.f32 %v16, %v18
    %v33 = vadd.f32 %v32, %v20
    %v34 = vadd.f32 %v33, %v22
    %v35 = vadd.f32 %v34, %v24
    %v36 = vadd.f32 %v35, %v26
    %v37 = vadd.f32 %v36, %v28
    %v38 = vadd.f32 %v37, %v30
    %v39 = vrot.slane %v38, 4
    %v40 = vadd.f32 %v38, %v39
    %v41 = vrot.slane %v40, 2
    %v42 = vadd.f32 %v40, %v41
    %v43 = vrot.slane %v42, 1
    %v44 = vadd.f32 %v42, %v43
    %v45 = vadd.f32 %v17, %v19
    %v46 = vadd.f32 %v45, %v21
    %v47 = vadd.f32 %v46, %v23
    %v48 = vadd.f32 %v47, %v25
    %v49 = vadd.f32 %v48, %v27
    %v50 = vadd.f32 %v49, %v29
    %v51 = vadd.f32 %v50, %v31
    %v52 = vrot.slane %v51, 4
    %v53 = vadd.f32 %v51, %v52
    %v54 = vrot.slane %v53, 2
    %v55 = vadd.f32 %v53, %v54
    %v56 = vrot.slane %v55, 1
    %v57 = vadd.f32 %v55, %v56
    %v58 = vld [vmem:[%s1] sm:$0x3]
    %v60 = vlaneseq
    %v61 = vshrl.u32 %v60, 7
    %v62 = vsub.s32 0, %v61
    %v63 = vrot.slane %v58, %v62
    %v64 = vlaneseq
    %v65 = vshrl.u32 %v64, 7
    %v66 = vsub.s32 1, %v65
    %v67 = vrot.slane %v58, %v66
    %v70 = vmul.f32 %v44, %v63
    %v71 = vmul.f32 %v57, %v67
    %s72 = sld [smem:[#allocation2]]
    %v73 = vstv %s72
    %v74 = vadd.f32 %v70, %v73
    %v75 = vadd.f32 %v71, %v73
    %v76 = vxor.u32 %v74, 2147483648
    %v77 = vxor.u32 %v75, 2147483648
    %v78 = vmul.f32 %v76, 1.442695
    %v79 = vpow.pop %v78
    %v80 = vmul.f32 %v77, 1.442695
    %v81 = vpow.pop %v80
    %v82 = vadd.f32 %v79, 1.0
    %v83 = vadd.f32 %v81, 1.0
    %v84 = vrcp.pop %v82
    %v85 = vmul.f32 1.0, %v84
    %v86 = vrcp.pop %v83
    %v87 = vmul.f32 1.0, %v86
    %v90 = vcombine.low %v85, %v87
    %v92 = vunpack.c.l.s4 1966171168
    %v93 = vunpack.c.0.s8 %v92
    %v94 = vlaneseq
    %v95 = vshrl.u32 %v94, 7
    %v96 = vsub.s32 %v93, %v95
    %v97 = vrot.slane %v90, %v96
    %v99 = vunpack.c.l.s4 1966171168
    %v100 = vunpack.c.0.s8 %v99
    %v101 = vlaneseq
    %v102 = vshrl.u32 %v101, 7
    %v103 = vsub.s32 %v100, %v102
    %v104 = vrot.slane %v97, %v103
    %v106 = vlaneseq
    %vm107 = vcmp.ge.s32.totalorder %v106, 0
    %vm108 = vcmp.lt.s32.totalorder %v106, 256
    %vm109 = vmand %vm107, %vm108
    %110 = vst.msk [vmem:[#allocation3] sm:$0x3] %vm109, %v104
    // Predicated region
    $region14: #{baseline_forward.1} parent=1 // pred_check
      _
    $region15: #{baseline_forward.1} parent=1 // pred_check_branch
      %112 = sbr.rel (0) target = $region17
    $region16: #{baseline_forward.1} parent=1 // pred_region
      %s114 = ssub.s32 32, 32
      %115 = vsyncadd [#allocation4], %s114
      %s117 = sshll.u32 [#allocation3], 4
      %s118 = int_to_ptr.vmem [resolvable:$true] %s117
      %120 = dma.vmem_to_hbm [thread:$0]  %s118, 32, %s3, [#allocation4]
    $region17: #{baseline_forward.1} parent=1 // pred_fallthru
      _
    // Predicated region
    $region18: #{baseline_forward.1} parent=1 // pred_check
      _
    $region19: #{baseline_forward.1} parent=1 // pred_check_branch
      %122 = sbr.rel (0) target = $region21
    $region20: #{baseline_forward.1} parent=1 // pred_region
      %123 = dma.done [#allocation4], 32
    $region21: #{baseline_forward.1} parent=1 // pred_fallthru
      _
    %124 = vsyncpa [#allocation4], 1

</llo_original>
